<compile_context>
chip_gen: v7x
topology: tpu7x:2x2x1
jax: 0.10.0
libtpu: 0.0.40
codegen_flags: <defaults>
</compile_context>

<pallas_src>
import math

import jax
import jax.numpy as jnp
from jax.experimental import pallas as pl
from jax.experimental.pallas import tpu as pltpu


def make_sinusoidal_pe(d_model: int, max_len: int = 500) -> jnp.ndarray:
    """Deterministic parameter setup (mirrors PyTorch __init__)."""
    position = jnp.arange(0, max_len, dtype=jnp.float32)[:, None]            # (max_len, 1)
    div_term = jnp.exp(
        jnp.arange(0, d_model, 2, dtype=jnp.float32) * (-math.log(10000.0) / d_model)
    )                                                                         # (ceil(d/2),)
    angles = position * div_term                                              # (max_len, ceil(d/2))
    pe = jnp.zeros((max_len, d_model), dtype=jnp.float32)
    pe = pe.at[:, 0::2].set(jnp.sin(angles))
    pe = pe.at[:, 1::2].set(jnp.cos(angles)[:, : d_model // 2])
    return pe                                                                 # (max_len, d_model)


def _add_pe_kernel(x_ref, pe_ref, o_ref):
    # x_ref: (TB, TL) tile of flattened activations; pe_ref: (1, TL) float32.
    # Compute in f32 (parity with the PyTorch float32 pe buffer), cast on store.
    o_ref[...] = (x_ref[...].astype(jnp.float32) + pe_ref[...]).astype(o_ref.dtype)


def _round_down(x: int, q: int) -> int:
    return (x // q) * q


def _vmem_budgets():
    """(per-buffer tile budget, scoped vmem limit) chosen per TPU generation."""
    cap = 64 * 1024 * 1024
    try:
        cap = getattr(pltpu.get_tpu_info(), "vmem_capacity_bytes", cap)
    except Exception:
        pass
    if cap <= 64 * 1024 * 1024:
        # v7x-class: 64 MiB physical VMEM per TensorCore.
        # 2x double-buffered x-in + 2x out at 6 MiB + small pe stays < 28 MiB.
        return 6 * 1024 * 1024, 48 * 1024 * 1024
    # v5e/v6e-class: 128 MiB physical VMEM.
    return 12 * 1024 * 1024, 64 * 1024 * 1024


def positional_encoding_forward(x: jnp.ndarray, pe_flat: jnp.ndarray) -> jnp.ndarray:
    """x: (B, S, D); pe_flat: (1, S*D) float32 (pre-sliced/flattened table)."""
    B, S, D = x.shape
    L = S * D
    assert pe_flat.shape == (1, L), f"pe_flat shape {pe_flat.shape} != (1, {L})"

    # Wrapper-side layout plumbing: lane-dense 2D view of the activations.
    x2 = x.reshape(B, L)

    itemsize = jnp.dtype(x.dtype).itemsize
    max_tile_bytes, vmem_limit = _vmem_budgets()

    # --- rows first: whole batch in one block if it fits the budget ---------
    # dtype-aware sublane quantum: 8 for f32, 16 for bf16, 32 for int8/fp8.
    row_q = max(8, 32 // itemsize)
    max_rows = max(row_q, max_tile_bytes // (128 * itemsize))
    if B <= max_rows:
        tb = B                                        # full row extent (always legal)
    else:
        tb = _round_down(max_rows, row_q)             # partial last row-block via cdiv grid

    # --- lanes fill the remaining per-buffer budget (multiples of 128) ------
    lane_budget = max(128, max_tile_bytes // (tb * itemsize))
    if L <= 128:
        tl = L                                        # full lane extent
    elif L % 128 == 0:
        tl = min(_round_down(lane_budget, 128), L)
    elif lane_budget >= L:
        tl = L                                        # full lane extent (legal even if unaligned)
    else:
        tl = _round_down(lane_budget, 128)            # partial last lane-block via cdiv grid

    # Keep >= 2 blocks on the leading 'parallel' axis so a v7x chip's two
    # TensorCores both get work — but only when each half-tile is still big
    # enough (>= ~2 MiB) that per-step overhead stays negligible.
    half_l = _round_down(L // 2, 128)
    if tl >= L and half_l >= 128 and tb * half_l * itemsize >= 2 * 1024 * 1024:
        tl = half_l

    n_l = pl.cdiv(L, tl)
    n_b = pl.cdiv(B, tb)

    out2 = pl.pallas_call(
        _add_pe_kernel,
        out_shape=jax.ShapeDtypeStruct((B, L), x.dtype),
        grid_spec=pltpu.PrefetchScalarGridSpec(
            num_scalar_prefetch=0,
            # Lane axis OUTER, batch axis INNER: the pe block index (0, l) is
            # constant across consecutive inner steps -> pe is not re-DMA'd
            # once per batch block.
            grid=(n_l, n_b),
            in_specs=[
                pl.BlockSpec((tb, tl), lambda l, b: (b, l)),   # x tile
                pl.BlockSpec((1, tl), lambda l, b: (0, l)),    # shared pe tile (f32)
            ],
            out_specs=pl.BlockSpec((tb, tl), lambda l, b: (b, l)),
        ),
        compiler_params=pltpu.CompilerParams(
            dimension_semantics=("parallel", "parallel"),
            vmem_limit_bytes=vmem_limit,
        ),
    )(x2, pe_flat)

    return out2.reshape(B, S, D)


class PositionalEncoding:
    """Mirrors the PyTorch module: holds the float32 pe table, adds it in forward."""

    def __init__(self, d_model: int, max_len: int = 500):
        self.d_model = d_model
        self.max_len = max_len
        self.pe = make_sinusoidal_pe(d_model, max_len)   # (max_len, d_model) float32
        self._pe_flat_cache = {}

    def _pe_flat(self, S: int) -> jnp.ndarray:
        # Hoisted out of the hot path: sliced/flattened once per sequence length.
        tab = self._pe_flat_cache.get(S)
        if tab is None:
            tab = self.pe[:S, :].reshape(1, S * self.d_model)
            self._pe_flat_cache[S] = tab
        return tab

    def __call__(self, x: jnp.ndarray) -> jnp.ndarray:
        B, S, D = x.shape
        assert D == self.d_model, f"d_model mismatch: {D} != {self.d_model}"
        assert S <= self.max_len, f"sequence length {S} exceeds positional table {self.max_len}"
        return positional_encoding_forward(x, self._pe_flat(S))


if __name__ == "__main__":
    B, S, D = 2, 8, 32
    MAX_LEN = 500

    key = jax.random.PRNGKey(0)
    x = jax.random.normal(key, (B, S, D), dtype=jnp.float32)

    module = PositionalEncoding(D, MAX_LEN)
    out = module(x)
    out = jax.block_until_ready(out)

    # sanity check against the pure-JAX reference
    ref = x + module.pe[None, :S, :]
    assert out.shape == (B, S, D)
    assert out.dtype == x.dtype
    assert jnp.allclose(out, ref, atol=1e-6), "mismatch vs reference"

    print("KERNEL_OK")
</pallas_src>

<mosaic_0001>
module attributes {stable_mosaic.version = 11 : i64} {
  func.func @_add_pe_kernel(%arg0: i32, %arg1: i32, %arg2: memref<2x256xf32, #tpu.memory_space<vmem>>, %arg3: memref<1x256xf32, #tpu.memory_space<vmem>>, %arg4: memref<2x256xf32, #tpu.memory_space<vmem>>) attributes {dimension_semantics = [#tpu.dimension_semantics<parallel>, #tpu.dimension_semantics<parallel>], iteration_bounds = array<i64: 1, 1>, scalar_prefetch = 0 : i64, scratch_operands = 0 : i64, tpu.core_type = #tpu.core_type<tc>, window_params = [{transform_indices = @transform_0, window_bounds = array<i64: 2, 256>}, {transform_indices = @transform_1, window_bounds = array<i64: 1, 256>}, {transform_indices = @transform_2, window_bounds = array<i64: 2, 256>}]} {
    %c0 = arith.constant 0 : index
    %c0_0 = arith.constant 0 : index
    %0 = vector.load %arg2[%c0, %c0_0] : memref<2x256xf32, #tpu.memory_space<vmem>>, vector<2x256xf32>
    %c0_1 = arith.constant 0 : index
    %c0_2 = arith.constant 0 : index
    %1 = vector.load %arg3[%c0_1, %c0_2] : memref<1x256xf32, #tpu.memory_space<vmem>>, vector<1x256xf32>
    %2 = vector.broadcast %1 : vector<1x256xf32> to vector<2x256xf32>
    %3 = arith.addf %0, %2 : vector<2x256xf32>
    %c0_3 = arith.constant 0 : index
    %c0_4 = arith.constant 0 : index
    %4 = vector.load %arg4[%c0_3, %c0_4] : memref<2x256xf32, #tpu.memory_space<vmem>>, vector<2x256xf32>
    tpu.vector_store %arg4[%c0_3, %c0_4], %3 {strides = array<i32>} : memref<2x256xf32, #tpu.memory_space<vmem>>, vector<2x256xf32>,
    return
  }
  func.func @transform_0(%arg0: i32, %arg1: i32) -> (i32, i32) {
    %c0_i32 = arith.constant 0 : i32
    return %arg1, %arg0 : i32, i32
  }
  func.func @transform_1(%arg0: i32, %arg1: i32) -> (i32, i32) {
    %c0_i32 = arith.constant 0 : i32
    %c0_i32_0 = arith.constant 0 : i32
    return %c0_i32, %arg0 : i32, i32
  }
  func.func @transform_2(%arg0: i32, %arg1: i32) -> (i32, i32) {
    %c0_i32 = arith.constant 0 : i32
    return %arg1, %arg0 : i32, i32
  }
}

</mosaic_0001>

<llo_original>
// kernel: tpu_custom_call.1
$region0: #{tpu_custom_call.1}
  #allocation0 [shape = 'u32[]', space=smem, size = 0x4, offset = 0x4, fixed_abs, tag = 'smem constant byte address 0x4 - core index']
  #allocation1 [shape = 'u32[144,128]{1,0:T(1,128)}', space=vmem, size = 0x12000, scoped, tag = 'internal scratch']
  %s0 = inlined_call_operand.hbm [shape: f32[2,256], index: 0, kind: input, shape index: {}]
  %s1 = inlined_call_operand.vmem [shape: f32[1,256], index: 1, kind: input, shape index: {}]
  %s2 = inlined_call_operand.hbm [shape: f32[2,256], index: 2, kind: output, shape index: {}]
  %s3 = sld [smem:[#allocation0]]
  $region22: #{tpu_custom_call.1} parent=0
    _
  %s5 = ssub.s32 1, %s3
  %s6 = scalar_select 0, %s5, %s3
  $region1: #{tpu_custom_call.1} parent=0
    #allocation2 [shape = 'u8[2048]{0}', space=vmem, size = 0x800, scoped, tag = 'input window, operand 0, single buffered']
    #allocation3 [shape = 's32[1]{0}', space=sflag, size = 0x4, scoped, tag = 'scoped memory for tpu_custom_call.1']
    #allocation4 [shape = 's32[1]{0}', space=sflag, size = 0x4, scoped, tag = 'scoped memory for tpu_custom_call.1']
    #allocation5 [shape = 'u8[2048]{0}', space=vmem, size = 0x800, scoped, tag = 'output window, operand 0, single buffered']
    %7 = vsyncpa [#allocation3], 0
    %8 = vsyncpa [#allocation4], 0
    // Predicated region
    $region2: #{tpu_custom_call.1} parent=1 // pred_check
      _
    $region3: #{tpu_custom_call.1} parent=1 // pred_check_branch
      %10 = sbr.rel (0) target = $region5
    $region4: #{tpu_custom_call.1} parent=1 // pred_region
      %s12 = ssub.s32 64, 64
      %13 = vsyncadd [#allocation3], %s12
      %s15 = sshll.u32 [#allocation2], 4
      %s16 = int_to_ptr.vmem [resolvable:$true] %s15
      %18 = dma.hbm_to_vmem [thread:$0]  %s0, 64, %s16, [#allocation3]
    $region5: #{tpu_custom_call.1} parent=1 // pred_fallthru
      _
    // Predicated region
    $region6: #{tpu_custom_call.1} parent=1 // pred_check
      _
    $region7: #{tpu_custom_call.1} parent=1 // pred_check_branch
      %20 = sbr.rel (0) target = $region9
    $region8: #{tpu_custom_call.1} parent=1 // pred_region
      _
    $region9: #{tpu_custom_call.1} parent=1 // pred_fallthru
      _
    // Predicated region
    $region10: #{tpu_custom_call.1} parent=1 // pred_check
      _
    $region11: #{tpu_custom_call.1} parent=1 // pred_check_branch
      %22 = sbr.rel (0) target = $region13
    $region12: #{tpu_custom_call.1} parent=1 // pred_region
      %23 = dma.done [#allocation3], 64
    $region13: #{tpu_custom_call.1} parent=1 // pred_fallthru
      _
    %v24 = vld [vmem:[#allocation2] sm:$0xf]
    %v25 = vld [vmem:[%s1] sm:$0x3]
    %v27 = vlaneseq
    %v28 = vshrl.u32 %v27, 7
    %v29 = vsub.s32 0, %v28
    %v30 = vrot.slane %v25, %v29
    %v31 = vlaneseq
    %v32 = vshrl.u32 %v31, 7
    %v33 = vsub.s32 1, %v32
    %v34 = vrot.slane %v25, %v33
    %v35 = vcombine.low %v30, %v34
    %v37 = vunpack.c.l.s4 1983009808
    %v38 = vunpack.c.0.s8 %v37
    %v39 = vlaneseq
    %v40 = vshrl.u32 %v39, 7
    %v41 = vsub.s32 %v38, %v40
    %v42 = vrot.slane %v35, %v41
    %v44 = vadd.f32 %v24, %v42
    %45 = vst [vmem:[#allocation5] sm:$0xf] %v44
    // Predicated region
    $region14: #{tpu_custom_call.1} parent=1 // pred_check
      _
    $region15: #{tpu_custom_call.1} parent=1 // pred_check_branch
      %47 = sbr.rel (0) target = $region17
    $region16: #{tpu_custom_call.1} parent=1 // pred_region
      %s49 = ssub.s32 64, 64
      %50 = vsyncadd [#allocation4], %s49
      %s52 = sshll.u32 [#allocation5], 4
      %s53 = int_to_ptr.vmem [resolvable:$true] %s52
      %55 = dma.vmem_to_hbm [thread:$0]  %s53, 64, %s2, [#allocation4]
    $region17: #{tpu_custom_call.1} parent=1 // pred_fallthru
      _
    // Predicated region
    $region18: #{tpu_custom_call.1} parent=1 // pred_check
      _
    $region19: #{tpu_custom_call.1} parent=1 // pred_check_branch
      %57 = sbr.rel (0) target = $region21
    $region20: #{tpu_custom_call.1} parent=1 // pred_region
      %58 = dma.done [#allocation4], 64
    $region21: #{tpu_custom_call.1} parent=1 // pred_fallthru
      _
    %59 = vsyncpa [#allocation3], 1
    %60 = vsyncpa [#allocation4], 1

</llo_original>
